<compile_context>
chip_gen: v5e
topology: v5e:2x2
jax: 0.10.0
libtpu: 0.0.40
codegen_flags: <defaults>
</compile_context>

<pallas_src>
from math import sqrt
import functools

import jax
import jax.numpy as jnp
from jax.experimental import pallas as pl
from jax.experimental.pallas import tpu as pltpu


def _attention_head_kernel(
    xq_ref, xk_ref, xv_ref,      # (bt, Sq, E) / (bt, kt, E) activation blocks
    wq_ref, wk_ref, wv_ref,      # (E, Hp) projection weights (transposed + zero-padded)
    bq_ref, bk_ref, bv_ref,      # (1, Hp) f32 biases (zero-padded)
    o_ref,                       # (bt, Sq, Hp) output block
    q_sc,                        # (bt, Sq, Hp) compute-dtype scratch: scaled Q
    m_sc, l_sc,                  # (bt, Sq, 1)  f32 online-softmax running max / denom
    acc_sc,                      # (bt, Sq, Hp) f32 output accumulator
    *, scale,                    # 1/sqrt(true head_dim), baked in at trace time
):
    kv = pl.program_id(1)
    bt, Sq, E = xq_ref.shape
    kt = xk_ref.shape[1]
    Hp = wq_ref.shape[1]
    cdt = q_sc.dtype

    @pl.when(kv == 0)
    def _init():
        # Project queries once per batch tile; fold 1/sqrt(d_k) into Q.
        # (Flattening the leading dims is a free view: E is the full last dim
        #  and Sq is a multiple of the 8-row sublane tile in practice.)
        xq = xq_ref[...].reshape(bt * Sq, E)
        q = jnp.dot(xq, wq_ref[...], preferred_element_type=jnp.float32) + bq_ref[...]
        q_sc[...] = (q * scale).astype(cdt).reshape(bt, Sq, Hp)
        m_sc[...] = jnp.full(m_sc.shape, -jnp.inf, m_sc.dtype)
        l_sc[...] = jnp.zeros(l_sc.shape, l_sc.dtype)
        acc_sc[...] = jnp.zeros(acc_sc.shape, acc_sc.dtype)

    # Project this key/value block (single MXU matmul each, f32 accumulation).
    xk = xk_ref[...].reshape(bt * kt, E)
    xv = xv_ref[...].reshape(bt * kt, E)
    k = (jnp.dot(xk, wk_ref[...], preferred_element_type=jnp.float32)
         + bk_ref[...]).astype(cdt).reshape(bt, kt, Hp)
    v = (jnp.dot(xv, wv_ref[...], preferred_element_type=jnp.float32)
         + bv_ref[...]).astype(cdt).reshape(bt, kt, Hp)

    # scores = q @ k^T, contracting the last dims directly (no transposed copy
    # of K).  Accumulate in f32.
    s = jnp.einsum("bqh,bkh->bqk", q_sc[...], k,
                   preferred_element_type=jnp.float32)

    # Online softmax update (elementwise math kept in f32: v5e-safe).
    m_new = jnp.maximum(m_sc[...], jnp.max(s, axis=-1, keepdims=True))
    alpha = jnp.exp(m_sc[...] - m_new)
    p = jnp.exp(s - m_new)
    l_sc[...] = alpha * l_sc[...] + jnp.sum(p, axis=-1, keepdims=True)
    acc_sc[...] = alpha * acc_sc[...] + jnp.einsum(
        "bqk,bkh->bqh", p.astype(cdt), v, preferred_element_type=jnp.float32)
    m_sc[...] = m_new

    @pl.when(kv == pl.num_programs(1) - 1)
    def _finalize():
        # Divide -> EUP reciprocal + VPU multiply.
        o_ref[...] = (acc_sc[...] * pl.reciprocal(l_sc[...], approx=True)
                      ).astype(o_ref.dtype)


def attention_head(xq, xk, xv, wq, bq, wk, bk, wv, bv, *,
                   batch_tile=None, key_tile=None,
                   compute_dtype=jnp.bfloat16):
    """xq: (B, Sq, E); xk/xv: (B, Skv, E). wq/wk/wv: (H, E) PyTorch layout. b*: (H,)."""
    B, Sq, E = xq.shape
    Bk, Skv, Ek = xk.shape
    assert xv.shape == xk.shape and Bk == B and Ek == E
    H = wq.shape[0]
    out_dtype = xq.dtype

    # Lane-dense head dim: pad to a multiple of 128 with zeros (unmasked vst).
    # Invariant: padded weight columns AND padded bias lanes are zero, so the
    # padded q/k/v lanes are exactly zero and scores/outputs are unchanged.
    Hp = max(128, ((H + 127) // 128) * 128)

    def pad_w(w):  # (H, E) torch layout -> (E, Hp), compute dtype
        return jnp.pad(w.T, ((0, 0), (0, Hp - H))).astype(compute_dtype)

    def pad_b(b):  # (H,) -> (1, Hp), kept f32 (added to the f32 accumulation)
        return jnp.pad(b, (0, Hp - H)).reshape(1, Hp).astype(jnp.float32)

    wq_p, wk_p, wv_p = pad_w(wq), pad_w(wk), pad_w(wv)
    bq_p, bk_p, bv_p = pad_b(bq), pad_b(bk), pad_b(bv)

    xq_c = xq.astype(compute_dtype)
    xk_c = xk.astype(compute_dtype)
    xv_c = xv.astype(compute_dtype)

    # Key-block size for the online softmax (bounds VMEM at large Skv).
    if key_tile is None:
        kt = Skv
        if Skv > 512 and Skv % 8 == 0:
            for cand in (512, 256, 128, 64, 32, 16, 8):
                if Skv % cand == 0:
                    kt = cand
                    break
    else:
        kt = key_tile
    assert Skv % kt == 0, "key_tile must divide the key sequence length"

    # Batch tile: target several pipeline steps (DMA/compute overlap, v7x
    # megacore sharding) while keeping the per-step VMEM footprint bounded.
    act_bytes = jnp.dtype(compute_dtype).itemsize
    out_bytes = jnp.dtype(out_dtype).itemsize
    per_b = (2 * Sq * E * act_bytes          # xq tile (double-buffered)
             + 2 * 2 * kt * E * act_bytes    # xk + xv tiles (double-buffered)
             + 2 * Sq * Hp * out_bytes       # output tile (double-buffered)
             + Sq * Hp * act_bytes           # Q scratch
             + Sq * Hp * 4 + 2 * Sq * 4      # f32 accumulator + m/l
             + 3 * Sq * kt * 4)              # scores / exp / probs temporaries
    if batch_tile is None:
        bt = max(1, B // 8)
        while bt > 1 and bt * per_b > (12 << 20):
            bt = max(1, bt // 2)
        while B % bt:
            bt -= 1
    else:
        bt = batch_tile
    assert B % bt == 0, "batch_tile must divide the batch"

    grid = (B // bt, Skv // kt)

    xq_spec = pl.BlockSpec((bt, Sq, E), lambda i, j: (i, 0, 0))
    xkv_spec = pl.BlockSpec((bt, kt, E), lambda i, j: (i, j, 0))
    # Constant-index weight/bias blocks: Pallas does not re-DMA blocks whose
    # index does not change between steps, so default buffering is fine here.
    w_spec = pl.BlockSpec((E, Hp), lambda i, j: (0, 0))
    b_spec = pl.BlockSpec((1, Hp), lambda i, j: (0, 0))
    out_spec = pl.BlockSpec((bt, Sq, Hp), lambda i, j: (i, 0, 0))

    kernel = functools.partial(_attention_head_kernel,
                               scale=1.0 / sqrt(float(H)))

    out_padded = pl.pallas_call(
        kernel,
        out_shape=jax.ShapeDtypeStruct((B, Sq, Hp), out_dtype),
        grid_spec=pltpu.PrefetchScalarGridSpec(
            num_scalar_prefetch=0,
            grid=grid,
            in_specs=[xq_spec, xkv_spec, xkv_spec,
                      w_spec, w_spec, w_spec,
                      b_spec, b_spec, b_spec],
            out_specs=out_spec,
            scratch_shapes=[
                pltpu.VMEM((bt, Sq, Hp), compute_dtype),   # scaled Q
                pltpu.VMEM((bt, Sq, 1), jnp.float32),      # running max
                pltpu.VMEM((bt, Sq, 1), jnp.float32),      # running denom
                pltpu.VMEM((bt, Sq, Hp), jnp.float32),     # output accumulator
            ]),
        compiler_params=pltpu.CompilerParams(
            dimension_semantics=("parallel", "arbitrary"),
            vmem_limit_bytes=32 * 1024 * 1024),
    )(xq_c, xk_c, xv_c, wq_p, wk_p, wv_p, bq_p, bk_p, bv_p)

    # Slice the real head dim back out of the lane-padded output.
    return out_padded[..., :H]


def attention_head_ref(xq, xk, xv, wq, bq, wk, bk, wv, bv):
    """Pure-JAX reference mirroring the PyTorch forward."""
    q = xq @ wq.T + bq
    k = xk @ wk.T + bk
    v = xv @ wv.T + bv
    scores = (q @ jnp.swapaxes(k, -2, -1)) / sqrt(q.shape[-1])
    w = jax.nn.softmax(scores, axis=-1)
    return w @ v


if __name__ == "__main__":
    B, S, E, H = 2, 8, 32, 16  # batch, seq, token_embed_dim, head_dim

    key = jax.random.PRNGKey(0)
    ks = jax.random.split(key, 9)
    xq = jax.random.normal(ks[0], (B, S, E), dtype=jnp.float32)
    xk = jax.random.normal(ks[1], (B, S, E), dtype=jnp.float32)
    xv = jax.random.normal(ks[2], (B, S, E), dtype=jnp.float32)

    # PyTorch nn.Linear init ranges; shapes W (H, E), b (H,).
    scale = 1.0 / sqrt(E)
    wq = jax.random.uniform(ks[3], (H, E), jnp.float32, -scale, scale)
    wk = jax.random.uniform(ks[4], (H, E), jnp.float32, -scale, scale)
    wv = jax.random.uniform(ks[5], (H, E), jnp.float32, -scale, scale)
    bq = jax.random.uniform(ks[6], (H,), jnp.float32, -scale, scale)
    bk = jax.random.uniform(ks[7], (H,), jnp.float32, -scale, scale)
    bv = jax.random.uniform(ks[8], (H,), jnp.float32, -scale, scale)

    ref = attention_head_ref(xq, xk, xv, wq, bq, wk, bk, wv, bv)

    # Full-precision compute path: only approx-reciprocal error remains.
    out_f32 = attention_head(xq, xk, xv, wq, bq, wk, bk, wv, bv,
                             compute_dtype=jnp.float32)
    out_f32 = jax.block_until_ready(out_f32)
    assert out_f32.shape == (B, S, H)
    assert jnp.allclose(out_f32, ref, atol=5e-3, rtol=5e-3), "f32 mismatch vs reference"

    # Default bf16 compute path (native MXU dtype; f32 accumulation/softmax).
    out_bf16 = attention_head(xq, xk, xv, wq, bq, wk, bk, wv, bv)
    out_bf16 = jax.block_until_ready(out_bf16)
    assert out_bf16.shape == (B, S, H)
    assert jnp.allclose(out_bf16, ref, atol=2e-2, rtol=2e-2), "bf16 mismatch vs reference"

    print("KERNEL_OK")
</pallas_src>

<mosaic_0001>
module attributes {stable_mosaic.version = 11 : i64} {
  func.func @_attention_head_kernel(%arg0: i32, %arg1: i32, %arg2: memref<1x8x32xf32, #tpu.memory_space<vmem>>, %arg3: memref<1x8x32xf32, #tpu.memory_space<vmem>>, %arg4: memref<1x8x32xf32, #tpu.memory_space<vmem>>, %arg5: memref<32x128xf32, #tpu.memory_space<vmem>>, %arg6: memref<32x128xf32, #tpu.memory_space<vmem>>, %arg7: memref<32x128xf32, #tpu.memory_space<vmem>>, %arg8: memref<1x128xf32, #tpu.memory_space<vmem>>, %arg9: memref<1x128xf32, #tpu.memory_space<vmem>>, %arg10: memref<1x128xf32, #tpu.memory_space<vmem>>, %arg11: memref<1x8x128xf32, #tpu.memory_space<vmem>>, %arg12: memref<1x8x128xf32, #tpu.memory_space<vmem>>, %arg13: memref<1x8x1xf32, #tpu.memory_space<vmem>>, %arg14: memref<1x8x1xf32, #tpu.memory_space<vmem>>, %arg15: memref<1x8x128xf32, #tpu.memory_space<vmem>>) attributes {dimension_semantics = [#tpu.dimension_semantics<parallel>, #tpu.dimension_semantics<arbitrary>], iteration_bounds = array<i64: 2, 1>, scalar_prefetch = 0 : i64, scratch_operands = 4 : i64, tpu.core_type = #tpu.core_type<tc>, window_params = [{transform_indices = @transform_0, window_bounds = array<i64: 1, 8, 32>}, {transform_indices = @transform_1, window_bounds = array<i64: 1, 8, 32>}, {transform_indices = @transform_2, window_bounds = array<i64: 1, 8, 32>}, {pipeline_mode = #tpu.pipeline_mode<synchronous>, transform_indices = @transform_3, window_bounds = array<i64: 32, 128>}, {pipeline_mode = #tpu.pipeline_mode<synchronous>, transform_indices = @transform_4, window_bounds = array<i64: 32, 128>}, {pipeline_mode = #tpu.pipeline_mode<synchronous>, transform_indices = @transform_5, window_bounds = array<i64: 32, 128>}, {pipeline_mode = #tpu.pipeline_mode<synchronous>, transform_indices = @transform_6, window_bounds = array<i64: 1, 128>}, {pipeline_mode = #tpu.pipeline_mode<synchronous>, transform_indices = @transform_7, window_bounds = array<i64: 1, 128>}, {pipeline_mode = #tpu.pipeline_mode<synchronous>, transform_indices = @transform_8, window_bounds = array<i64: 1, 128>}, {transform_indices = @transform_9, window_bounds = array<i64: 1, 8, 128>}]} {
    %c0_i32 = arith.constant 0 : i32
    %0 = arith.cmpi eq, %arg1, %c0_i32 : i32
    %1 = arith.extui %0 : i1 to i32
    %c0_i32_0 = arith.constant 0 : i32
    %2 = arith.cmpi ne, %1, %c0_i32_0 : i32
    scf.if %2 {
      %c0_45 = arith.constant 0 : index
      %c0_46 = arith.constant 0 : index
      %c0_47 = arith.constant 0 : index
      %47 = vector.load %arg2[%c0_45, %c0_46, %c0_47] : memref<1x8x32xf32, #tpu.memory_space<vmem>>, vector<1x8x32xf32>
      %48 = vector.shape_cast %47 : vector<1x8x32xf32> to vector<8x32xf32>
      %c0_48 = arith.constant 0 : index
      %c0_49 = arith.constant 0 : index
      %49 = vector.load %arg5[%c0_48, %c0_49] : memref<32x128xf32, #tpu.memory_space<vmem>>, vector<32x128xf32>
      %cst_50 = arith.constant dense<0.000000e+00> : vector<8x128xf32>
      %50 = tpu.matmul %48, %49, %cst_50 {dimension_numbers = #tpu.dot_dimension_numbers<[1], [0], [0], [1], [0, 0, 1, 1], [], []>} : vector<8x32xf32>, vector<32x128xf32>, vector<8x128xf32> -> vector<8x128xf32>
      %c0_51 = arith.constant 0 : index
      %c0_52 = arith.constant 0 : index
      %51 = vector.load %arg8[%c0_51, %c0_52] : memref<1x128xf32, #tpu.memory_space<vmem>>, vector<1x128xf32>
      %52 = vector.broadcast %51 : vector<1x128xf32> to vector<8x128xf32>
      %53 = arith.addf %50, %52 : vector<8x128xf32>
      %cst_53 = arith.constant 2.500000e-01 : f32
      %54 = vector.broadcast %cst_53 : f32 to vector<8x128xf32>
      %55 = arith.mulf %53, %54 : vector<8x128xf32>
      %56 = vector.shape_cast %55 : vector<8x128xf32> to vector<1x8x128xf32>
      %c0_54 = arith.constant 0 : index
      %c0_55 = arith.constant 0 : index
      %c0_56 = arith.constant 0 : index
      %57 = vector.load %arg12[%c0_54, %c0_55, %c0_56] : memref<1x8x128xf32, #tpu.memory_space<vmem>>, vector<1x8x128xf32>
      tpu.vector_store %arg12[%c0_54, %c0_55, %c0_56], %56 {strides = array<i32>} : memref<1x8x128xf32, #tpu.memory_space<vmem>>, vector<1x8x128xf32>,
      %cst_57 = arith.constant 0xFF800000 : f32
      %58 = vector.broadcast %cst_57 : f32 to vector<1x8x1xf32>
      %c0_58 = arith.constant 0 : index
      %c0_59 = arith.constant 0 : index
      %c0_60 = arith.constant 0 : index
      %59 = vector.load %arg13[%c0_58, %c0_59, %c0_60] : memref<1x8x1xf32, #tpu.memory_space<vmem>>, vector<1x8x1xf32>
      tpu.vector_store %arg13[%c0_58, %c0_59, %c0_60], %58 {strides = array<i32>} : memref<1x8x1xf32, #tpu.memory_space<vmem>>, vector<1x8x1xf32>,
      %cst_61 = arith.constant 0.000000e+00 : f32
      %60 = vector.broadcast %cst_61 : f32 to vector<1x8x1xf32>
      %c0_62 = arith.constant 0 : index
      %c0_63 = arith.constant 0 : index
      %c0_64 = arith.constant 0 : index
      %61 = vector.load %arg14[%c0_62, %c0_63, %c0_64] : memref<1x8x1xf32, #tpu.memory_space<vmem>>, vector<1x8x1xf32>
      tpu.vector_store %arg14[%c0_62, %c0_63, %c0_64], %60 {strides = array<i32>} : memref<1x8x1xf32, #tpu.memory_space<vmem>>, vector<1x8x1xf32>,
      %cst_65 = arith.constant 0.000000e+00 : f32
      %62 = vector.broadcast %cst_65 : f32 to vector<1x8x128xf32>
      %c0_66 = arith.constant 0 : index
      %c0_67 = arith.constant 0 : index
      %c0_68 = arith.constant 0 : index
      %63 = vector.load %arg15[%c0_66, %c0_67, %c0_68] : memref<1x8x128xf32, #tpu.memory_space<vmem>>, vector<1x8x128xf32>
      tpu.vector_store %arg15[%c0_66, %c0_67, %c0_68], %62 {strides = array<i32>} : memref<1x8x128xf32, #tpu.memory_space<vmem>>, vector<1x8x128xf32>,
    } else {
    }
    %c0 = arith.constant 0 : index
    %c0_1 = arith.constant 0 : index
    %c0_2 = arith.constant 0 : index
    %3 = vector.load %arg3[%c0, %c0_1, %c0_2] : memref<1x8x32xf32, #tpu.memory_space<vmem>>, vector<1x8x32xf32>
    %4 = vector.shape_cast %3 : vector<1x8x32xf32> to vector<8x32xf32>
    %c0_3 = arith.constant 0 : index
    %c0_4 = arith.constant 0 : index
    %c0_5 = arith.constant 0 : index
    %5 = vector.load %arg4[%c0_3, %c0_4, %c0_5] : memref<1x8x32xf32, #tpu.memory_space<vmem>>, vector<1x8x32xf32>
    %6 = vector.shape_cast %5 : vector<1x8x32xf32> to vector<8x32xf32>
    %c0_6 = arith.constant 0 : index
    %c0_7 = arith.constant 0 : index
    %7 = vector.load %arg6[%c0_6, %c0_7] : memref<32x128xf32, #tpu.memory_space<vmem>>, vector<32x128xf32>
    %cst = arith.constant dense<0.000000e+00> : vector<8x128xf32>
    %8 = tpu.matmul %4, %7, %cst {dimension_numbers = #tpu.dot_dimension_numbers<[1], [0], [0], [1], [0, 0, 1, 1], [], []>} : vector<8x32xf32>, vector<32x128xf32>, vector<8x128xf32> -> vector<8x128xf32>
    %c0_8 = arith.constant 0 : index
    %c0_9 = arith.constant 0 : index
    %9 = vector.load %arg9[%c0_8, %c0_9] : memref<1x128xf32, #tpu.memory_space<vmem>>, vector<1x128xf32>
    %10 = vector.broadcast %9 : vector<1x128xf32> to vector<8x128xf32>
    %11 = arith.addf %8, %10 : vector<8x128xf32>
    %12 = vector.shape_cast %11 : vector<8x128xf32> to vector<1x8x128xf32>
    %c0_10 = arith.constant 0 : index
    %c0_11 = arith.constant 0 : index
    %13 = vector.load %arg7[%c0_10, %c0_11] : memref<32x128xf32, #tpu.memory_space<vmem>>, vector<32x128xf32>
    %cst_12 = arith.constant dense<0.000000e+00> : vector<8x128xf32>
    %14 = tpu.matmul %6, %13, %cst_12 {dimension_numbers = #tpu.dot_dimension_numbers<[1], [0], [0], [1], [0, 0, 1, 1], [], []>} : vector<8x32xf32>, vector<32x128xf32>, vector<8x128xf32> -> vector<8x128xf32>
    %c0_13 = arith.constant 0 : index
    %c0_14 = arith.constant 0 : index
    %15 = vector.load %arg10[%c0_13, %c0_14] : memref<1x128xf32, #tpu.memory_space<vmem>>, vector<1x128xf32>
    %16 = vector.broadcast %15 : vector<1x128xf32> to vector<8x128xf32>
    %17 = arith.addf %14, %16 : vector<8x128xf32>
    %18 = vector.shape_cast %17 : vector<8x128xf32> to vector<1x8x128xf32>
    %c0_15 = arith.constant 0 : index
    %c0_16 = arith.constant 0 : index
    %c0_17 = arith.constant 0 : index
    %19 = vector.load %arg12[%c0_15, %c0_16, %c0_17] : memref<1x8x128xf32, #tpu.memory_space<vmem>>, vector<1x8x128xf32>
    "tpu.trace_start"() <{level = 10 : i32, message = "bqh,bkh->bqk"}> : () -> ()
    %cst_18 = arith.constant dense<0.000000e+00> : vector<1x8x8xf32>
    %20 = tpu.matmul %19, %12, %cst_18 {dimension_numbers = #tpu.dot_dimension_numbers<[2], [2], [1], [1], [0, 0, 0, 1, 1, 1], [0], [0]>} : vector<1x8x128xf32>, vector<1x8x128xf32>, vector<1x8x8xf32> -> vector<1x8x8xf32>
    "tpu.trace_stop"() : () -> ()
    %c0_19 = arith.constant 0 : index
    %c0_20 = arith.constant 0 : index
    %c0_21 = arith.constant 0 : index
    %21 = vector.load %arg13[%c0_19, %c0_20, %c0_21] : memref<1x8x1xf32, #tpu.memory_space<vmem>>, vector<1x8x1xf32>
    %cst_22 = arith.constant dense<0xFF800000> : vector<1x8xf32>
    %22 = vector.multi_reduction <maximumf>, %20, %cst_22 [2] : vector<1x8x8xf32> to vector<1x8xf32>
    %23 = vector.shape_cast %22 : vector<1x8xf32> to vector<1x8x1xf32>
    %24 = arith.maximumf %21, %23 : vector<1x8x1xf32>
    %c0_23 = arith.constant 0 : index
    %c0_24 = arith.constant 0 : index
    %c0_25 = arith.constant 0 : index
    %25 = vector.load %arg13[%c0_23, %c0_24, %c0_25] : memref<1x8x1xf32, #tpu.memory_space<vmem>>, vector<1x8x1xf32>
    %26 = arith.subf %25, %24 : vector<1x8x1xf32>
    %27 = math.exp %26 : vector<1x8x1xf32>
    %28 = vector.broadcast %24 : vector<1x8x1xf32> to vector<1x8x8xf32>
    %29 = arith.subf %20, %28 : vector<1x8x8xf32>
    %30 = math.exp %29 : vector<1x8x8xf32>
    %c0_26 = arith.constant 0 : index
    %c0_27 = arith.constant 0 : index
    %c0_28 = arith.constant 0 : index
    %31 = vector.load %arg14[%c0_26, %c0_27, %c0_28] : memref<1x8x1xf32, #tpu.memory_space<vmem>>, vector<1x8x1xf32>
    %32 = arith.mulf %27, %31 : vector<1x8x1xf32>
    %cst_29 = arith.constant dense<0.000000e+00> : vector<1x8xf32>
    %33 = vector.multi_reduction <add>, %30, %cst_29 [2] : vector<1x8x8xf32> to vector<1x8xf32>
    %34 = vector.shape_cast %33 : vector<1x8xf32> to vector<1x8x1xf32>
    %35 = arith.addf %32, %34 : vector<1x8x1xf32>
    %c0_30 = arith.constant 0 : index
    %c0_31 = arith.constant 0 : index
    %c0_32 = arith.constant 0 : index
    %36 = vector.load %arg14[%c0_30, %c0_31, %c0_32] : memref<1x8x1xf32, #tpu.memory_space<vmem>>, vector<1x8x1xf32>
    tpu.vector_store %arg14[%c0_30, %c0_31, %c0_32], %35 {strides = array<i32>} : memref<1x8x1xf32, #tpu.memory_space<vmem>>, vector<1x8x1xf32>,
    %c0_33 = arith.constant 0 : index
    %c0_34 = arith.constant 0 : index
    %c0_35 = arith.constant 0 : index
    %37 = vector.load %arg15[%c0_33, %c0_34, %c0_35] : memref<1x8x128xf32, #tpu.memory_space<vmem>>, vector<1x8x128xf32>
    %38 = vector.broadcast %27 : vector<1x8x1xf32> to vector<1x8x128xf32>
    %39 = arith.mulf %38, %37 : vector<1x8x128xf32>
    "tpu.trace_start"() <{level = 10 : i32, message = "bqk,bkh->bqh"}> : () -> ()
    %cst_36 = arith.constant dense<0.000000e+00> : vector<1x8x128xf32>
    %40 = tpu.matmul %30, %18, %cst_36 {dimension_numbers = #tpu.dot_dimension_numbers<[2], [1], [1], [2], [0, 0, 0, 1, 1, 2], [0], [0]>} : vector<1x8x8xf32>, vector<1x8x128xf32>, vector<1x8x128xf32> -> vector<1x8x128xf32>
    "tpu.trace_stop"() : () -> ()
    %41 = arith.addf %39, %40 : vector<1x8x128xf32>
    %c0_37 = arith.constant 0 : index
    %c0_38 = arith.constant 0 : index
    %c0_39 = arith.constant 0 : index
    %42 = vector.load %arg15[%c0_37, %c0_38, %c0_39] : memref<1x8x128xf32, #tpu.memory_space<vmem>>, vector<1x8x128xf32>
    tpu.vector_store %arg15[%c0_37, %c0_38, %c0_39], %41 {strides = array<i32>} : memref<1x8x128xf32, #tpu.memory_space<vmem>>, vector<1x8x128xf32>,
    %c0_40 = arith.constant 0 : index
    %c0_41 = arith.constant 0 : index
    %c0_42 = arith.constant 0 : index
    %43 = vector.load %arg13[%c0_40, %c0_41, %c0_42] : memref<1x8x1xf32, #tpu.memory_space<vmem>>, vector<1x8x1xf32>
    tpu.vector_store %arg13[%c0_40, %c0_41, %c0_42], %24 {strides = array<i32>} : memref<1x8x1xf32, #tpu.memory_space<vmem>>, vector<1x8x1xf32>,
    %c0_i32_43 = arith.constant 0 : i32
    %44 = arith.cmpi eq, %arg1, %c0_i32_43 : i32
    %45 = arith.extui %44 : i1 to i32
    %c0_i32_44 = arith.constant 0 : i32
    %46 = arith.cmpi ne, %45, %c0_i32_44 : i32
    scf.if %46 {
      %c0_45 = arith.constant 0 : index
      %c0_46 = arith.constant 0 : index
      %c0_47 = arith.constant 0 : index
      %47 = vector.load %arg15[%c0_45, %c0_46, %c0_47] : memref<1x8x128xf32, #tpu.memory_space<vmem>>, vector<1x8x128xf32>
      %c0_48 = arith.constant 0 : index
      %c0_49 = arith.constant 0 : index
      %c0_50 = arith.constant 0 : index
      %48 = vector.load %arg14[%c0_48, %c0_49, %c0_50] : memref<1x8x1xf32, #tpu.memory_space<vmem>>, vector<1x8x1xf32>
      %49 = tpu.reciprocal %48 {approx = true} : vector<1x8x1xf32> -> vector<1x8x1xf32>
      %50 = vector.broadcast %49 : vector<1x8x1xf32> to vector<1x8x128xf32>
      %51 = arith.mulf %47, %50 : vector<1x8x128xf32>
      %c0_51 = arith.constant 0 : index
      %c0_52 = arith.constant 0 : index
      %c0_53 = arith.constant 0 : index
      %52 = vector.load %arg11[%c0_51, %c0_52, %c0_53] : memref<1x8x128xf32, #tpu.memory_space<vmem>>, vector<1x8x128xf32>
      tpu.vector_store %arg11[%c0_51, %c0_52, %c0_53], %51 {strides = array<i32>} : memref<1x8x128xf32, #tpu.memory_space<vmem>>, vector<1x8x128xf32>,
    } else {
    }
    return
  }
  func.func @transform_0(%arg0: i32, %arg1: i32) -> (i32, i32, i32) {
    %c0_i32 = arith.constant 0 : i32
    %c0_i32_0 = arith.constant 0 : i32
    %c0_i32_1 = arith.constant 0 : i32
    return %arg0, %c0_i32, %c0_i32_0 : i32, i32, i32
  }
  func.func @transform_1(%arg0: i32, %arg1: i32) -> (i32, i32, i32) {
    %c0_i32 = arith.constant 0 : i32
    %c0_i32_0 = arith.constant 0 : i32
    return %arg0, %arg1, %c0_i32 : i32, i32, i32
  }
  func.func @transform_2(%arg0: i32, %arg1: i32) -> (i32, i32, i32) {
    %c0_i32 = arith.constant 0 : i32
    %c0_i32_0 = arith.constant 0 : i32
    return %arg0, %arg1, %c0_i32 : i32, i32, i32
  }
  func.func @transform_3(%arg0: i32, %arg1: i32) -> (i32, i32) {
    %c0_i32 = arith.constant 0 : i32
    %c0_i32_0 = arith.constant 0 : i32
    %c0_i32_1 = arith.constant 0 : i32
    return %c0_i32, %c0_i32_0 : i32, i32
  }
  func.func @transform_4(%arg0: i32, %arg1: i32) -> (i32, i32) {
    %c0_i32 = arith.constant 0 : i32
    %c0_i32_0 = arith.constant 0 : i32
    %c0_i32_1 = arith.constant 0 : i32
    return %c0_i32, %c0_i32_0 : i32, i32
  }
  func.func @transform_5(%arg0: i32, %arg1: i32) -> (i32, i32) {
    %c0_i32 = arith.constant 0 : i32
    %c0_i32_0 = arith.constant 0 : i32
    %c0_i32_1 = arith.constant 0 : i32
    return %c0_i32, %c0_i32_0 : i32, i32
  }
  func.func @transform_6(%arg0: i32, %arg1: i32) -> (i32, i32) {
    %c0_i32 = arith.constant 0 : i32
    %c0_i32_0 = arith.constant 0 : i32
    %c0_i32_1 = arith.constant 0 : i32
    return %c0_i32, %c0_i32_0 : i32, i32
  }
  func.func @transform_7(%arg0: i32, %arg1: i32) -> (i32, i32) {
    %c0_i32 = arith.constant 0 : i32
    %c0_i32_0 = arith.constant 0 : i32
    %c0_i32_1 = arith.constant 0 : i32
    return %c0_i32, %c0_i32_0 : i32, i32
  }
  func.func @transform_8(%arg0: i32, %arg1: i32) -> (i32, i32) {
    %c0_i32 = arith.constant 0 : i32
    %c0_i32_0 = arith.constant 0 : i32
    %c0_i32_1 = arith.constant 0 : i32
    return %c0_i32, %c0_i32_0 : i32, i32
  }
  func.func @transform_9(%arg0: i32, %arg1: i32) -> (i32, i32, i32) {
    %c0_i32 = arith.constant 0 : i32
    %c0_i32_0 = arith.constant 0 : i32
    %c0_i32_1 = arith.constant 0 : i32
    return %arg0, %c0_i32, %c0_i32_0 : i32, i32, i32
  }
}

</mosaic_0001>

<llo_original>
// kernel: tpu_custom_call.1
$region0: #{tpu_custom_call.1}
  #allocation0 [shape = 'u32[]', space=smem, size = 0x4, offset = 0x4, fixed_abs, tag = 'smem constant byte address 0x4 - core index']
  #allocation1 [shape = 'u32[72,128]{1,0:T(1,128)}', space=vmem, size = 0x9000, scoped, tag = 'internal scratch']
  #allocation2 [shape = 'f32[1,8,128]{2,1,0:T(8,128)}', space=vmem, size = 0x1000, scoped, tag = 'scratch operand']
  #allocation3 [shape = 'f32[1,8,1]{2,1,0:T(8,128)}', space=vmem, size = 0x1000, scoped, tag = 'scratch operand']
  #allocation4 [shape = 'f32[1,8,1]{2,1,0:T(8,128)}', space=vmem, size = 0x1000, scoped, tag = 'scratch operand']
  #allocation5 [shape = 'f32[1,8,128]{2,1,0:T(8,128)}', space=vmem, size = 0x1000, scoped, tag = 'scratch operand']
  %s0 = inlined_call_operand.hbm [shape: f32[2,8,32], index: 0, kind: input, shape index: {}]
  %s1 = inlined_call_operand.hbm [shape: f32[2,8,32], index: 1, kind: input, shape index: {}]
  %s2 = inlined_call_operand.hbm [shape: f32[2,8,32], index: 2, kind: input, shape index: {}]
  %s3 = inlined_call_operand.hbm [shape: f32[32,128], index: 3, kind: input, shape index: {}]
  %s4 = inlined_call_operand.hbm [shape: f32[32,128], index: 4, kind: input, shape index: {}]
  %s5 = inlined_call_operand.hbm [shape: f32[32,128], index: 5, kind: input, shape index: {}]
  %s6 = inlined_call_operand.vmem [shape: f32[1,128], index: 6, kind: input, shape index: {}]
  %s7 = inlined_call_operand.vmem [shape: f32[1,128], index: 7, kind: input, shape index: {}]
  %s8 = inlined_call_operand.vmem [shape: f32[1,128], index: 8, kind: input, shape index: {}]
  %s9 = inlined_call_operand.hbm [shape: f32[2,8,128], index: 9, kind: output, shape index: {}]
  %s10 = sld [smem:[#allocation0]]
  $region101: #{tpu_custom_call.1} parent=0
    _
  %s12 = ssub.s32 1, %s10
  %s13 = scalar_select 0, %s12, %s10
  $region1: #{tpu_custom_call.1} parent=0
    #allocation6 [shape = 'u8[8192]{0}', space=vmem, size = 0x2000, scoped, tag = 'input window, operand 0']
    #allocation7 [shape = 's32[2]{0}', space=sflag, size = 0x8, scoped, tag = 'scoped memory for tpu_custom_call.1']
    #allocation8 [shape = 's32[2]{0}', space=sflag, size = 0x8, scoped, tag = 'scoped memory for tpu_custom_call.1']
    #allocation9 [shape = 'u8[8192]{0}', space=vmem, size = 0x2000, scoped, tag = 'input window, operand 1']
    #allocation10 [shape = 's32[2]{0}', space=sflag, size = 0x8, scoped, tag = 'scoped memory for tpu_custom_call.1']
    #allocation11 [shape = 'u8[8192]{0}', space=vmem, size = 0x2000, scoped, tag = 'input window, operand 2']
    #allocation12 [shape = 'u8[16384]{0}', space=vmem, size = 0x4000, scoped, tag = 'input window, operand 3, single buffered']
    #allocation13 [shape = 's32[1]{0}', space=sflag, size = 0x4, scoped, tag = 'scoped memory for tpu_custom_call.1']
    #allocation14 [shape = 'u8[16384]{0}', space=vmem, size = 0x4000, scoped, tag = 'input window, operand 4, single buffered']
    #allocation15 [shape = 'u8[16384]{0}', space=vmem, size = 0x4000, scoped, tag = 'input window, operand 5, single buffered']
    #allocation16 [shape = 's32[1]{0}', space=sflag, size = 0x4, scoped, tag = 'scoped memory for tpu_custom_call.1']
    #allocation17 [shape = 'u8[8192]{0}', space=vmem, size = 0x2000, scoped, tag = 'output window, operand 0']
    %14 = vsyncpa [#allocation7], 0
    %s15 = scalar_lea.sflag [#allocation7], 1
    %16 = vsyncpa %s15, 0
    %17 = vsyncpa [#allocation10], 0
    %s18 = scalar_lea.sflag [#allocation10], 1
    %19 = vsyncpa %s18, 0
    %20 = vsyncpa [#allocation13], 0
    %21 = vsyncpa [#allocation16], 0
    %22 = vsyncpa [#allocation8], 0
    %s23 = scalar_lea.sflag [#allocation8], 1
    %24 = vsyncpa %s23, 0
    loop: start=0, step=1, limit=4
    $region2: #{tpu_custom_call.1} parent=1 // loop_pre_header
      _
    $region3: #{tpu_custom_call.1} parent=1 // loop_header
      %s26 = sphi 0, %s30
      %p27 = scmp.ge.s32.totalorder %s26, 4
      %s33 = sphi 0, %s45
      %s34 = sphi 0, %s41
      %s35 = sphi 0, %s33
      %s36 = sphi 0, %s34
      %s37 = sphi 0, %s35
      %s38 = sphi 0, %s36
      %s48 = sphi 0, %s50
      %s51 = sphi 0, %s48
      %s52 = sphi 0, %s51
      %s68 = sphi 0, %s52
      %s76 = sphi 0, %s78
      %s79 = sphi 0, %s76
      %s80 = sphi 0, %s79
      %s96 = sphi 0, %s80
      %s104 = sphi 0, %s106
      %s107 = sphi 0, %s104
      %s108 = sphi 0, %s107
      %s124 = sphi 0, %s108
      %s128 = sphi 0, %s128
      %s130 = sphi 0, %s128
      %s131 = sphi 0, %s130
      %s145 = sphi 0, %s131
      %s149 = sphi 0, %s149
      %s151 = sphi 0, %s149
      %s152 = sphi 0, %s151
      %s166 = sphi 0, %s152
      %s170 = sphi 0, %s170
      %s172 = sphi 0, %s170
      %s173 = sphi 0, %s172
      %s187 = sphi 0, %s173
      %s191 = sphi 0, %s191
      %s193 = sphi 0, %s191
      %s194 = sphi 0, %s193
      %s208 = sphi 0, %s194
      %s212 = sphi 0, %s212
      %s214 = sphi 0, %s212
      %s215 = sphi 0, %s214
      %s229 = sphi 0, %s215
      %s233 = sphi 0, %s233
      %s235 = sphi 0, %s233
      %s236 = sphi 0, %s235
      %s250 = sphi 0, %s236
      %s256 = sphi 0, %s258
      %s259 = sphi 0, %s256
      %s260 = sphi 0, %s259
      %s276 = sphi 0, %s260
    $region4: #{tpu_custom_call.1} parent=1 // loop_header_branch
      %29 = sbr.rel (%p27) target = $region8
    $region5: #{tpu_custom_call.1} parent=1 // loop_body
      %s31 = ssub.s32 %s26, 1
      %s32 = ssub.s32 %s26, 2
      %s39 = sadd.s32 1, %s34
      %p40 = scmp.ge.s32.totalorder %s39, 1
      %s41 = scalar_select %p40, 0, %s39
      %s42 = sadd.s32 1, %s33
      %s43 = scalar_select %p40, %s42, %s33
      %p44 = scmp.ge.s32.totalorder %s43, 2
      %s45 = scalar_select %p44, 0, %s43
      %s46 = ssub.s32 %s33, %s45
      %p47 = scmp.eq.s32.totalorder %s46, 0
      %s49 = sadd.s32 %s48, 1
      %s50 = scalar_select %p47, %s48, %s49
      %p53 = pneg %p47
      %p54 = scmp.eq.s32.totalorder %s26, 1
      %p55 = por %p53, %p54
      %p56 = scmp.ne.s32.totalorder %s48, %s51
      %p57 = scmp.eq.s32.totalorder %s26, 0
      %p58 = por %p56, %p57
      %p59 = scmp.ne.s32.totalorder %s48, %s51
      %p60 = scmp.eq.s32.totalorder %s31, 1
      %p61 = por %p59, %p60
      %p62 = scmp.ne.s32.totalorder %s51, %s52
      %p63 = scmp.eq.s32.totalorder %s31, 0
      %p64 = por %p62, %p63
      %p65 = scmp.ne.s32.totalorder %s51, %s52
      %p66 = scmp.eq.s32.totalorder %s32, 1
      %p67 = por %p65, %p66
      %p69 = scmp.ne.s32.totalorder %s52, %s68
      %p70 = scmp.eq.s32.totalorder %s32, 0
      %p71 = por %p69, %p70
      %s72 = ssub.s32 %s33, %s45
      %s73 = ssub.s32 %s34, %s41
      %s74 = sor.u32 %s72, %s73
      %p75 = scmp.eq.s32.totalorder %s74, 0
      %s77 = sadd.s32 %s76, 1
      %s78 = scalar_select %p75, %s76, %s77
      %p81 = pneg %p75
      %p82 = scmp.eq.s32.totalorder %s26, 1
      %p83 = por %p81, %p82
      %p84 = scmp.ne.s32.totalorder %s76, %s79
      %p85 = scmp.eq.s32.totalorder %s26, 0
      %p86 = por %p84, %p85
      %p87 = scmp.ne.s32.totalorder %s76, %s79
      %p88 = scmp.eq.s32.totalorder %s31, 1
      %p89 = por %p87, %p88
      %p90 = scmp.ne.s32.totalorder %s79, %s80
      %p91 = scmp.eq.s32.totalorder %s31, 0
      %p92 = por %p90, %p91
      %p93 = scmp.ne.s32.totalorder %s79, %s80
      %p94 = scmp.eq.s32.totalorder %s32, 1
      %p95 = por %p93, %p94
      %p97 = scmp.ne.s32.totalorder %s80, %s96
      %p98 = scmp.eq.s32.totalorder %s32, 0
      %p99 = por %p97, %p98
      %s100 = ssub.s32 %s33, %s45
      %s101 = ssub.s32 %s34, %s41
      %s102 = sor.u32 %s100, %s101
      %p103 = scmp.eq.s32.totalorder %s102, 0
      %s105 = sadd.s32 %s104, 1
      %s106 = scalar_select %p103, %s104, %s105
      %p109 = pneg %p103
      %p110 = scmp.eq.s32.totalorder %s26, 1
      %p111 = por %p109, %p110
      %p112 = scmp.ne.s32.totalorder %s104, %s107
      %p113 = scmp.eq.s32.totalorder %s26, 0
      %p114 = por %p112, %p113
      %p115 = scmp.ne.s32.totalorder %s104, %s107
      %p116 = scmp.eq.s32.totalorder %s31, 1
      %p117 = por %p115, %p116
      %p118 = scmp.ne.s32.totalorder %s107, %s108
      %p119 = scmp.eq.s32.totalorder %s31, 0
      %p120 = por %p118, %p119
      %p121 = scmp.ne.s32.totalorder %s107, %s108
      %p122 = scmp.eq.s32.totalorder %s32, 1
      %p123 = por %p121, %p122
      %p125 = scmp.ne.s32.totalorder %s108, %s124
      %p126 = scmp.eq.s32.totalorder %s32, 0
      %p127 = por %p125, %p126
      %s129 = sadd.s32 %s128, 1
      %p132 = scmp.eq.s32.totalorder %s26, 1
      %p133 = scmp.ne.s32.totalorder %s128, %s130
      %p134 = scmp.eq.s32.totalorder %s26, 0
      %p135 = por %p133, %p134
      %p136 = scmp.ne.s32.totalorder %s128, %s130
      %p137 = scmp.eq.s32.totalorder %s31, 1
      %p138 = por %p136, %p137
      %p139 = scmp.ne.s32.totalorder %s130, %s131
      %p140 = scmp.eq.s32.totalorder %s31, 0
      %p141 = por %p139, %p140
      %p142 = scmp.ne.s32.totalorder %s130, %s131
      %p143 = scmp.eq.s32.totalorder %s32, 1
      %p144 = por %p142, %p143
      %p146 = scmp.ne.s32.totalorder %s131, %s145
      %p147 = scmp.eq.s32.totalorder %s32, 0
      %p148 = por %p146, %p147
      %s150 = sadd.s32 %s149, 1
      %p153 = scmp.eq.s32.totalorder %s26, 1
      %p154 = scmp.ne.s32.totalorder %s149, %s151
      %p155 = scmp.eq.s32.totalorder %s26, 0
      %p156 = por %p154, %p155
      %p157 = scmp.ne.s32.totalorder %s149, %s151
      %p158 = scmp.eq.s32.totalorder %s31, 1
      %p159 = por %p157, %p158
      %p160 = scmp.ne.s32.totalorder %s151, %s152
      %p161 = scmp.eq.s32.totalorder %s31, 0
      %p162 = por %p160, %p161
      %p163 = scmp.ne.s32.totalorder %s151, %s152
      %p164 = scmp.eq.s32.totalorder %s32, 1
      %p165 = por %p163, %p164
      %p167 = scmp.ne.s32.totalorder %s152, %s166
      %p168 = scmp.eq.s32.totalorder %s32, 0
      %p169 = por %p167, %p168
      %s171 = sadd.s32 %s170, 1
      %p174 = scmp.eq.s32.totalorder %s26, 1
      %p175 = scmp.ne.s32.totalorder %s170, %s172
      %p176 = scmp.eq.s32.totalorder %s26, 0
      %p177 = por %p175, %p176
      %p178 = scmp.ne.s32.totalorder %s170, %s172
      %p179 = scmp.eq.s32.totalorder %s31, 1
      %p180 = por %p178, %p179
      %p181 = scmp.ne.s32.totalorder %s172, %s173
      %p182 = scmp.eq.s32.totalorder %s31, 0
      %p183 = por %p181, %p182
      %p184 = scmp.ne.s32.totalorder %s172, %s173
      %p185 = scmp.eq.s32.totalorder %s32, 1
      %p186 = por %p184, %p185
      %p188 = scmp.ne.s32.totalorder %s173, %s187
      %p189 = scmp.eq.s32.totalorder %s32, 0
      %p190 = por %p188, %p189
      %s192 = sadd.s32 %s191, 1
      %p195 = scmp.eq.s32.totalorder %s26, 1
      %p196 = scmp.ne.s32.totalorder %s191, %s193
      %p197 = scmp.eq.s32.totalorder %s26, 0
      %p198 = por %p196, %p197
      %p199 = scmp.ne.s32.totalorder %s191, %s193
      %p200 = scmp.eq.s32.totalorder %s31, 1
      %p201 = por %p199, %p200
      %p202 = scmp.ne.s32.totalorder %s193, %s194
      %p203 = scmp.eq.s32.totalorder %s31, 0
      %p204 = por %p202, %p203
      %p205 = scmp.ne.s32.totalorder %s193, %s194
      %p206 = scmp.eq.s32.totalorder %s32, 1
      %p207 = por %p205, %p206
      %p209 = scmp.ne.s32.totalorder %s194, %s208
      %p210 = scmp.eq.s32.totalorder %s32, 0
      %p211 = por %p209, %p210
      %s213 = sadd.s32 %s212, 1
      %p216 = scmp.eq.s32.totalorder %s26, 1
      %p217 = scmp.ne.s32.totalorder %s212, %s214
      %p218 = scmp.eq.s32.totalorder %s26, 0
      %p219 = por %p217, %p218
      %p220 = scmp.ne.s32.totalorder %s212, %s214
      %p221 = scmp.eq.s32.totalorder %s31, 1
      %p222 = por %p220, %p221
      %p223 = scmp.ne.s32.totalorder %s214, %s215
      %p224 = scmp.eq.s32.totalorder %s31, 0
      %p225 = por %p223, %p224
      %p226 = scmp.ne.s32.totalorder %s214, %s215
      %p227 = scmp.eq.s32.totalorder %s32, 1
      %p228 = por %p226, %p227
      %p230 = scmp.ne.s32.totalorder %s215, %s229
      %p231 = scmp.eq.s32.totalorder %s32, 0
      %p232 = por %p230, %p231
      %s234 = sadd.s32 %s233, 1
      %p237 = scmp.eq.s32.totalorder %s26, 1
      %p238 = scmp.ne.s32.totalorder %s233, %s235
      %p239 = scmp.eq.s32.totalorder %s26, 0
      %p240 = por %p238, %p239
      %p241 = scmp.ne.s32.totalorder %s233, %s235
      %p242 = scmp.eq.s32.totalorder %s31, 1
      %p243 = por %p241, %p242
      %p244 = scmp.ne.s32.totalorder %s235, %s236
      %p245 = scmp.eq.s32.totalorder %s31, 0
      %p246 = por %p244, %p245
      %p247 = scmp.ne.s32.totalorder %s235, %s236
      %p248 = scmp.eq.s32.totalorder %s32, 1
      %p249 = por %p247, %p248
      %p251 = scmp.ne.s32.totalorder %s236, %s250
      %p252 = scmp.eq.s32.totalorder %s32, 0
      %p253 = por %p251, %p252
      %s254 = ssub.s32 %s33, %s45
      %p255 = scmp.eq.s32.totalorder %s254, 0
      %s257 = sadd.s32 %s256, 1
      %s258 = scalar_select %p255, %s256, %s257
      %p261 = pneg %p255
      %p262 = scmp.eq.s32.totalorder %s26, 1
      %p263 = por %p261, %p262
      %p264 = scmp.ne.s32.totalorder %s256, %s259
      %p265 = scmp.eq.s32.totalorder %s26, 0
      %p266 = por %p264, %p265
      %p267 = scmp.ne.s32.totalorder %s256, %s259
      %p268 = scmp.eq.s32.totalorder %s31, 1
      %p269 = por %p267, %p268
      %p270 = scmp.ne.s32.totalorder %s259, %s260
      %p271 = scmp.eq.s32.totalorder %s31, 0
      %p272 = por %p270, %p271
      %p273 = scmp.ne.s32.totalorder %s259, %s260
      %p274 = scmp.eq.s32.totalorder %s32, 1
      %p275 = por %p273, %p274
      %p277 = scmp.ne.s32.totalorder %s260, %s276
      %p278 = scmp.eq.s32.totalorder %s32, 0
      %p279 = por %p277, %p278
      %p280 = scmp.le.s32.totalorder 1, %s26
      %p281 = scmp.lt.s32.totalorder %s26, 3
      %p282 = pnand %p280, %p281
      %p283 = pneg %p282
      // Predicated region
      $region9: #{tpu_custom_call.1} parent=5 // pred_check
        _
      $region10: #{tpu_custom_call.1} parent=5 // pred_check_branch
        %285 = sbr.rel (%p282) target = $region12
      $region11: #{tpu_custom_call.1} parent=5 // pred_region
        %s286 = ssub.s32 %s26, 1
        // Predicated region
        $region13: #{tpu_custom_call.1} parent=11 // pred_check
          %p287 = pneg %p141
        $region14: #{tpu_custom_call.1} parent=11 // pred_check_branch
          %289 = sbr.rel (%p287) target = $region16
        $region15: #{tpu_custom_call.1} parent=11 // pred_region
          %291 = vsyncadd [#allocation13], 0
          %s292 = sshll.u32 %s3, 4
          %s293 = int_to_ptr.hbm [resolvable:$true] %s292
          %s294 = sshll.u32 [#allocation12], 4
          %s295 = int_to_ptr.vmem [resolvable:$true] %s294
          %300 = dma.hbm_to_vmem [thread:$0]  %s293, 512, %s295, [#allocation13], 128, 128, 8
        $region16: #{tpu_custom_call.1} parent=11 // pred_fallthru
          _
        // Predicated region
        $region17: #{tpu_custom_call.1} parent=11 // pred_check
          %p301 = pneg %p162
        $region18: #{tpu_custom_call.1} parent=11 // pred_check_branch
          %303 = sbr.rel (%p301) target = $region20
        $region19: #{tpu_custom_call.1} parent=11 // pred_region
          %305 = vsyncadd [#allocation13], 0
          %s306 = sshll.u32 %s4, 4
          %s307 = int_to_ptr.hbm [resolvable:$true] %s306
          %s308 = sshll.u32 [#allocation14], 4
          %s309 = int_to_ptr.vmem [resolvable:$true] %s308
          %314 = dma.hbm_to_vmem [thread:$0]  %s307, 512, %s309, [#allocation13], 128, 128, 8
        $region20: #{tpu_custom_call.1} parent=11 // pred_fallthru
          _
        // Predicated region
        $region21: #{tpu_custom_call.1} parent=11 // pred_check
          %p315 = pneg %p183
        $region22: #{tpu_custom_call.1} parent=11 // pred_check_branch
          %317 = sbr.rel (%p315) target = $region24
        $region23: #{tpu_custom_call.1} parent=11 // pred_region
          %319 = vsyncadd [#allocation16], 0
          %s320 = sshll.u32 %s5, 4
          %s321 = int_to_ptr.hbm [resolvable:$true] %s320
          %s322 = sshll.u32 [#allocation15], 4
          %s323 = int_to_ptr.vmem [resolvable:$true] %s322
          %328 = dma.hbm_to_vmem [thread:$0]  %s321, 512, %s323, [#allocation16], 128, 128, 8
        $region24: #{tpu_custom_call.1} parent=11 // pred_fallthru
          _
        // Predicated region
        $region25: #{tpu_custom_call.1} parent=11 // pred_check
          %p329 = pneg %p204
        $region26: #{tpu_custom_call.1} parent=11 // pred_check_branch
          %331 = sbr.rel (%p329) target = $region28
        $region27: #{tpu_custom_call.1} parent=11 // pred_region
          _
        $region28: #{tpu_custom_call.1} parent=11 // pred_fallthru
          _
        // Predicated region
        $region29: #{tpu_custom_call.1} parent=11 // pred_check
          %p332 = pneg %p225
        $region30: #{tpu_custom_call.1} parent=11 // pred_check_branch
          %334 = sbr.rel (%p332) target = $region32
        $region31: #{tpu_custom_call.1} parent=11 // pred_region
          _
        $region32: #{tpu_custom_call.1} parent=11 // pred_fallthru
          _
        // Predicated region
        $region33: #{tpu_custom_call.1} parent=11 // pred_check
          %p335 = pneg %p246
        $region34: #{tpu_custom_call.1} parent=11 // pred_check_branch
          %337 = sbr.rel (%p335) target = $region36
        $region35: #{tpu_custom_call.1} parent=11 // pred_region
          _
        $region36: #{tpu_custom_call.1} parent=11 // pred_fallthru
          _
      $region12: #{tpu_custom_call.1} parent=5 // pred_fallthru
        _
      %p338 = scmp.lt.s32.totalorder %s26, 2
      // Predicated region
      $region37: #{tpu_custom_call.1} parent=5 // pred_check
        %p339 = pneg %p338
      $region38: #{tpu_custom_call.1} parent=5 // pred_check_branch
        %341 = sbr.rel (%p339) target = $region40
      $region39: #{tpu_custom_call.1} parent=5 // pred_region
        // Predicated region
        $region41: #{tpu_custom_call.1} parent=39 // pred_check
          %p342 = pneg %p58
        $region42: #{tpu_custom_call.1} parent=39 // pred_check_branch
          %344 = sbr.rel (%p342) target = $region44
        $region43: #{tpu_custom_call.1} parent=39 // pred_region
          %s345 = sand.u32 %s48, 1
          %s346 = scalar_lea.sflag [#allocation7], %s345
          %s347 = sand.u32 %s48, 1
          %s348 = smul.addr %s347, 8
          %s349 = scalar_lea.vmem [#allocation6], %s348
          %351 = vsyncadd %s346, 0
          %s352 = smul.addr %s33, 8
          %s353 = scalar_lea.hbm %s0, %s352
          %s355 = sshll.u32 %s353, 4
          %s356 = int_to_ptr.hbm [resolvable:$true] %s355
          %s357 = sshll.u32 %s349, 4
          %s358 = int_to_ptr.vmem [resolvable:$true] %s357
          %360 = dma.hbm_to_vmem [thread:$0]  %s356, 128, %s358, %s346
        $region44: #{tpu_custom_call.1} parent=39 // pred_fallthru
          _
        // Predicated region
        $region45: #{tpu_custom_call.1} parent=39 // pred_check
          %p361 = pneg %p86
        $region46: #{tpu_custom_call.1} parent=39 // pred_check_branch
          %363 = sbr.rel (%p361) target = $region48
        $region47: #{tpu_custom_call.1} parent=39 // pred_region
          %s364 = sand.u32 %s26, 1
          %s365 = scalar_lea.sflag [#allocation10], %s364
          %s366 = sand.u32 %s76, 1
          %s367 = smul.addr %s366, 8
          %s368 = scalar_lea.vmem [#allocation9], %s367
          %370 = vsyncadd %s365, 0
          %s371 = sadd.s32 %s34, %s33
          %s372 = smul.addr %s371, 8
          %s373 = scalar_lea.hbm %s1, %s372
          %s375 = sshll.u32 %s373, 4
          %s376 = int_to_ptr.hbm [resolvable:$true] %s375
          %s377 = sshll.u32 %s368, 4
          %s378 = int_to_ptr.vmem [resolvable:$true] %s377
          %380 = dma.hbm_to_vmem [thread:$0]  %s376, 128, %s378, %s365
        $region48: #{tpu_custom_call.1} parent=39 // pred_fallthru
          _
        // Predicated region
        $region49: #{tpu_custom_call.1} parent=39 // pred_check
          %p381 = pneg %p114
        $region50: #{tpu_custom_call.1} parent=39 // pred_check_branch
          %383 = sbr.rel (%p381) target = $region52
        $region51: #{tpu_custom_call.1} parent=39 // pred_region
          %s384 = sand.u32 %s26, 1
          %s385 = scalar_lea.sflag [#allocation10], %s384
          %s386 = sand.u32 %s104, 1
          %s387 = smul.addr %s386, 8
          %s388 = scalar_lea.vmem [#allocation11], %s387
          %390 = vsyncadd %s385, 0
          %s391 = sadd.s32 %s34, %s33
          %s392 = smul.addr %s391, 8
          %s393 = scalar_lea.hbm %s2, %s392
          %s395 = sshll.u32 %s393, 4
          %s396 = int_to_ptr.hbm [resolvable:$true] %s395
          %s397 = sshll.u32 %s388, 4
          %s398 = int_to_ptr.vmem [resolvable:$true] %s397
          %400 = dma.hbm_to_vmem [thread:$0]  %s396, 128, %s398, %s385
        $region52: #{tpu_custom_call.1} parent=39 // pred_fallthru
          _
      $region40: #{tpu_custom_call.1} parent=5 // pred_fallthru
        _
      %p401 = scmp.le.s32.totalorder 1, %s26
      %p402 = scmp.lt.s32.totalorder %s26, 3
      %p403 = pnand %p401, %p402
      %p404 = pneg %p403
      // Predicated region
      $region53: #{tpu_custom_call.1} parent=5 // pred_check
        _
      $region54: #{tpu_custom_call.1} parent=5 // pred_check_branch
        %406 = sbr.rel (%p403) target = $region56
      $region55: #{tpu_custom_call.1} parent=5 // pred_region
        %s407 = ssub.s32 %s26, 1
        %s408 = sand.u32 %s51, 1
        %s409 = scalar_lea.sflag [#allocation7], %s408
        %s410 = sand.u32 %s51, 1
        %s411 = smul.addr %s410, 8
        %s412 = scalar_lea.vmem [#allocation6], %s411
        // Predicated region
        $region57: #{tpu_custom_call.1} parent=55 // pred_check
          %p413 = pneg %p64
        $region58: #{tpu_custom_call.1} parent=55 // pred_check_branch
          %415 = sbr.rel (%p413) target = $region60
        $region59: #{tpu_custom_call.1} parent=55 // pred_region
          %417 = dma.done %s409, 128
        $region60: #{tpu_custom_call.1} parent=55 // pred_fallthru
          _
        %s418 = sand.u32 %s31, 1
        %s419 = scalar_lea.sflag [#allocation10], %s418
        %s420 = sand.u32 %s79, 1
        %s421 = smul.addr %s420, 8
        %s422 = scalar_lea.vmem [#allocation9], %s421
        // Predicated region
        $region61: #{tpu_custom_call.1} parent=55 // pred_check
          %p423 = pneg %p92
        $region62: #{tpu_custom_call.1} parent=55 // pred_check_branch
          %425 = sbr.rel (%p423) target = $region64
        $region63: #{tpu_custom_call.1} parent=55 // pred_region
          %427 = dma.done %s419, 128
        $region64: #{tpu_custom_call.1} parent=55 // pred_fallthru
          _
        %s428 = sand.u32 %s31, 1
        %s429 = scalar_lea.sflag [#allocation10], %s428
        %s430 = sand.u32 %s107, 1
        %s431 = smul.addr %s430, 8
        %s432 = scalar_lea.vmem [#allocation11], %s431
        // Predicated region
        $region65: #{tpu_custom_call.1} parent=55 // pred_check
          %p433 = pneg %p120
        $region66: #{tpu_custom_call.1} parent=55 // pred_check_branch
          %435 = sbr.rel (%p433) target = $region68
        $region67: #{tpu_custom_call.1} parent=55 // pred_region
          %437 = dma.done %s429, 128
        $region68: #{tpu_custom_call.1} parent=55 // pred_fallthru
          _
        // Predicated region
        $region69: #{tpu_custom_call.1} parent=55 // pred_check
          %p438 = pneg %p141
        $region70: #{tpu_custom_call.1} parent=55 // pred_check_branch
          %440 = sbr.rel (%p438) target = $region72
        $region71: #{tpu_custom_call.1} parent=55 // pred_region
          %442 = dma.done [#allocation13], 512
        $region72: #{tpu_custom_call.1} parent=55 // pred_fallthru
          _
        // Predicated region
        $region73: #{tpu_custom_call.1} parent=55 // pred_check
          %p443 = pneg %p162
        $region74: #{tpu_custom_call.1} parent=55 // pred_check_branch
          %445 = sbr.rel (%p443) target = $region76
        $region75: #{tpu_custom_call.1} parent=55 // pred_region
          %447 = dma.done [#allocation13], 512
        $region76: #{tpu_custom_call.1} parent=55 // pred_fallthru
          _
        // Predicated region
        $region77: #{tpu_custom_call.1} parent=55 // pred_check
          %p448 = pneg %p183
        $region78: #{tpu_custom_call.1} parent=55 // pred_check_branch
          %450 = sbr.rel (%p448) target = $region80
        $region79: #{tpu_custom_call.1} parent=55 // pred_region
          %452 = dma.done [#allocation16], 512
        $region80: #{tpu_custom_call.1} parent=55 // pred_fallthru
          _
        %s453 = sand.u32 %s51, 1
        %s454 = scalar_lea.sflag [#allocation7], %s453
        %s455 = sand.u32 %s51, 1
        %s456 = smul.addr %s455, 8
        %s457 = scalar_lea.vmem [#allocation6], %s456
        %p458 = pneg %p64
        %p459 = pneg %p61
        %s460 = sand.u32 %s31, 1
        %s461 = scalar_lea.sflag [#allocation10], %s460
        %s462 = sand.u32 %s79, 1
        %s463 = smul.addr %s462, 8
        %s464 = scalar_lea.vmem [#allocation9], %s463
        %p465 = pneg %p92
        %p466 = pneg %p89
        %s467 = sand.u32 %s31, 1
        %s468 = scalar_lea.sflag [#allocation10], %s467
        %s469 = sand.u32 %s107, 1
        %s470 = smul.addr %s469, 8
        %s471 = scalar_lea.vmem [#allocation11], %s470
        %p472 = pneg %p120
        %p473 = pneg %p117
        %p474 = pneg %p141
        %p475 = pneg %p138
        %p476 = pneg %p162
        %p477 = pneg %p159
        %p478 = pneg %p183
        %p479 = pneg %p180
        %p480 = pneg %p204
        %p481 = pneg %p201
        %p482 = pneg %p225
        %p483 = pneg %p222
        %p484 = pneg %p246
        %p485 = pneg %p243
        %p486 = pneg %p272
        %p487 = pneg %p269
        %s488 = sand.u32 %s259, 1
        %s489 = scalar_lea.sflag [#allocation8], %s488
        %s490 = sand.u32 %s259, 1
        %s491 = smul.addr %s490, 8
        %s492 = scalar_lea.vmem [#allocation17], %s491
        %p493 = scmp.eq.s32.totalorder %s36, 0
        // Predicated region
        $region81: #{tpu_custom_call.1} parent=55 // pred_check
          %p494 = pneg %p493
        $region82: #{tpu_custom_call.1} parent=55 // pred_check_branch
          %496 = sbr.rel (%p494) target = $region84
        $region83: #{tpu_custom_call.1} parent=55 // pred_region
          %v497 = vld [vmem:[%s412] sm:$0xff]
          %v498 = vld [vmem:[#allocation12] sm:$0xff]
          %v499 = vld [vmem:[#allocation12 + $0x8] sm:$0xff]
          %v500 = vld [vmem:[#allocation12 + $0x10] sm:$0xff]
          %v501 = vld [vmem:[#allocation12 + $0x18] sm:$0xff]
          %v502 = vld [vmem:[%s6] sm:$0x1]
          %v504 = vperm.slane %v502, 0
          %vm506 = vcmask 261120
          %v508 = vsel %vm506, %v497, 0
          %510 = vmatpush.msra.mxu0 0.0
          %511 = vmatpush.msra.mxu0 0.0
          %512 = vmatpush.msra.mxu0 0.0
          %513 = vmatpush.msra.mxu0 0.0
          %514 = vmatpush.msra.mxu0 0.0
          %515 = vmatpush.msra.mxu0 0.0
          %516 = vmatpush.msra.mxu0 0.0
          %517 = vmatpush.msra.mxu0 0.0
          %518 = vmatpush.msra.mxu0 0.0
          %519 = vmatpush.msra.mxu0 0.0
          %520 = vmatpush.msra.mxu0 0.0
          %521 = vmatpush.msra.mxu0 0.0
          %522 = vmatpush.msra.mxu0 %v501
          %523 = vmatpush.msra.mxu0 %v500
          %524 = vmatpush.msra.mxu0 %v499
          %525 = vmatpush.msra.mxu0 %v498
          %526 = vmatmul.f32.gmra.mxu0 %v508
          %v527 = vpop.f32.mrf.mxu0
          %v528 = vadd.f32 %v504, %v527
          %529 = vdwg.mxu0
          %v530 = vmul.f32 %v528, 0.25
          %531 = vst [vmem:[#allocation2] sm:$0xff] %v530
          %vm532 = vcmask 7168
          %533 = vst.msk [vmem:[#allocation3] sm:$0xff] %vm532, -inf
          %534 = vst.msk [vmem:[#allocation4] sm:$0xff] %vm532, 0.0
          %535 = vst [vmem:[#allocation5] sm:$0xff] 0.0
        $region84: #{tpu_custom_call.1} parent=55 // pred_fallthru
          _
        %v536 = vld [vmem:[%s422] sm:$0xff]
        %v537 = vld [vmem:[%s432] sm:$0xff]
        %v538 = vld [vmem:[#allocation14] sm:$0xff]
        %v539 = vld [vmem:[#allocation14 + $0x8] sm:$0xff]
        %v540 = vld [vmem:[#allocation14 + $0x10] sm:$0xff]
        %v541 = vld [vmem:[#allocation14 + $0x18] sm:$0xff]
        %v542 = vld [vmem:[%s7] sm:$0x1]
        %v544 = vperm.slane %v542, 0
        %vm546 = vcmask 261120
        %v548 = vsel %vm546, %v536, 0
        %550 = vmatpush.msra.mxu0 0.0
        %551 = vmatpush.msra.mxu0 0.0
        %552 = vmatpush.msra.mxu0 0.0
        %553 = vmatpush.msra.mxu0 0.0
        %554 = vmatpush.msra.mxu0 0.0
        %555 = vmatpush.msra.mxu0 0.0
        %556 = vmatpush.msra.mxu0 0.0
        %557 = vmatpush.msra.mxu0 0.0
        %558 = vmatpush.msra.mxu0 0.0
        %559 = vmatpush.msra.mxu0 0.0
        %560 = vmatpush.msra.mxu0 0.0
        %561 = vmatpush.msra.mxu0 0.0
        %562 = vmatpush.msra.mxu0 %v541
        %563 = vmatpush.msra.mxu0 %v540
        %564 = vmatpush.msra.mxu0 %v539
        %565 = vmatpush.msra.mxu0 %v538
        %566 = vmatmul.f32.gmra.mxu0 %v548
        %v567 = vpop.f32.mrf.mxu0
        %v568 = vadd.f32 %v544, %v567
        %569 = vdwg.mxu0
        %v570 = vld [vmem:[#allocation15] sm:$0xff]
        %v571 = vld [vmem:[#allocation15 + $0x8] sm:$0xff]
        %v572 = vld [vmem:[#allocation15 + $0x10] sm:$0xff]
        %v573 = vld [vmem:[#allocation15 + $0x18] sm:$0xff]
        %v574 = vld [vmem:[%s8] sm:$0x1]
        %v576 = vperm.slane %v574, 0
        %v579 = vsel %vm546, %v537, 0
        %581 = vmatpush.msra.mxu0 0.0
        %582 = vmatpush.msra.mxu0 0.0
        %583 = vmatpush.msra.mxu0 0.0
        %584 = vmatpush.msra.mxu0 0.0
        %585 = vmatpush.msra.mxu0 0.0
        %586 = vmatpush.msra.mxu0 0.0
        %587 = vmatpush.msra.mxu0 0.0
        %588 = vmatpush.msra.mxu0 0.0
        %589 = vmatpush.msra.mxu0 0.0
        %590 = vmatpush.msra.mxu0 0.0
        %591 = vmatpush.msra.mxu0 0.0
        %592 = vmatpush.msra.mxu0 0.0
        %593 = vmatpush.msra.mxu0 %v573
        %594 = vmatpush.msra.mxu0 %v572
        %595 = vmatpush.msra.mxu0 %v571
        %596 = vmatpush.msra.mxu0 %v570
        %597 = vmatmul.f32.gmra.mxu0 %v579
        %v598 = vpop.f32.mrf.mxu0
        %v599 = vadd.f32 %v576, %v598
        %600 = vdwg.mxu0
        %v601 = vld [vmem:[#allocation2] sm:$0xff]
        %602 = vmatpush.xpose.msra.mxu0 0.0
        %603 = vmatpush.xpose.msra.mxu0 0.0
        %604 = vmatpush.xpose.msra.mxu0 0.0
        %605 = vmatpush.xpose.msra.mxu0 0.0
        %606 = vmatpush.xpose.msra.mxu0 0.0
        %607 = vmatpush.xpose.msra.mxu0 0.0
        %608 = vmatpush.xpose.msra.mxu0 0.0
        %609 = vmatpush.xpose.msra.mxu0 0.0
        %610 = vmatpush.xpose.msra.mxu0 0.0
        %611 = vmatpush.xpose.msra.mxu0 0.0
        %612 = vmatpush.xpose.msra.mxu0 0.0
        %613 = vmatpush.xpose.msra.mxu0 0.0
        %614 = vmatpush.xpose.msra.mxu0 0.0
        %615 = vmatpush.xpose.msra.mxu0 0.0
        %616 = vmatpush.xpose.msra.mxu0 0.0
        %617 = vmatpush.xpose.msra.mxu0 %v568
        %618 = vmatmul.f32.gmra.mxu0 %v601
        %v619 = vpop.f32.mrf.mxu0
        %v620 = vadd.f32 0.0, %v619
        %621 = vdwg.mxu0
        %v622 = vld [vmem:[#allocation3] sm:$0xff]
        %vm623 = vcmask 64512
        %v624 = vsel %vm623, %v620, -inf
        %625 = vmax.xlane.f32.xlu0 %v624
        %v626 = vpop.xlane.xlu0 %625
        %v627 = vmax.f32 %v622, %v626
        %v628 = vsub.f32 %v622, %v627
        %v629 = vmul.f32 %v628, 1.442695
        %v630 = vpow.pop %v629
        %632 = vset.pattern.permute.xlu0 0
        %633 = vperm.xlu0 %632, %v627
        %v634 = vpop.permute.xlu0 %633
        %v636 = vsub.f32 %v620, %v634
        %v637 = vmul.f32 %v636, 1.442695
        %v638 = vpow.pop %v637
        %v639 = vld [vmem:[#allocation4] sm:$0xff]
        %v640 = vmul.f32 %v630, %v639
        %v641 = vsel %vm623, %v638, 0.0
        %642 = vadd.xlane.f32.xlu0 %v641
        %v643 = vpop.xlane.xlu0 %642
        %v644 = vadd.f32 %v640, %v643
        %vm645 = vcmask 7168
        %646 = vst.msk [vmem:[#allocation4] sm:$0xff] %vm645, %v644
        %v647 = vld [vmem:[#allocation5] sm:$0xff]
        %649 = vset.pattern.permute.xlu0 0
        %650 = vperm.xlu0 %649, %v630
        %v651 = vpop.permute.xlu0 %650
        %v653 = vmul.f32 %v651, %v647
        %v655 = vsel %vm623, %v638, 0
        %657 = vmatpush.msra.mxu0 0.0
        %658 = vmatpush.msra.mxu0 0.0
        %659 = vmatpush.msra.mxu0 0.0
        %660 = vmatpush.msra.mxu0 0.0
        %661 = vmatpush.msra.mxu0 0.0
        %662 = vmatpush.msra.mxu0 0.0
        %663 = vmatpush.msra.mxu0 0.0
        %664 = vmatpush.msra.mxu0 0.0
        %665 = vmatpush.msra.mxu0 0.0
        %666 = vmatpush.msra.mxu0 0.0
        %667 = vmatpush.msra.mxu0 0.0
        %668 = vmatpush.msra.mxu0 0.0
        %669 = vmatpush.msra.mxu0 0.0
        %670 = vmatpush.msra.mxu0 0.0
        %671 = vmatpush.msra.mxu0 0.0
        %672 = vmatpush.msra.mxu0 %v599
        %673 = vmatmul.f32.gmra.mxu0 %v655
        %v674 = vpop.f32.mrf.mxu0
        %v675 = vadd.f32 0.0, %v674
        %676 = vdwg.mxu0
        %v677 = vadd.f32 %v653, %v675
        %678 = vst [vmem:[#allocation5] sm:$0xff] %v677
        %679 = vst.msk [vmem:[#allocation3] sm:$0xff] %vm645, %v627
        // Predicated region
        $region85: #{tpu_custom_call.1} parent=55 // pred_check
          %p680 = pneg %p493
        $region86: #{tpu_custom_call.1} parent=55 // pred_check_branch
          %682 = sbr.rel (%p680) target = $region88
        $region87: #{tpu_custom_call.1} parent=55 // pred_region
          %v683 = vld [vmem:[#allocation5] sm:$0xff]
          %v684 = vld [vmem:[#allocation4] sm:$0xff]
          %v685 = vrcp.pop %v684
          %687 = vset.pattern.permute.xlu0 0
          %688 = vperm.xlu0 %687, %v685
          %v689 = vpop.permute.xlu0 %688
          %v691 = vmul.f32 %v683, %v689
          %692 = vst [vmem:[%s492] sm:$0xff] %v691
        $region88: #{tpu_custom_call.1} parent=55 // pred_fallthru
          _
        %s693 = sand.u32 %s259, 1
        %s694 = scalar_lea.sflag [#allocation8], %s693
        %s695 = sand.u32 %s259, 1
        %s696 = smul.addr %s695, 8
        %s697 = scalar_lea.vmem [#allocation17], %s696
        // Predicated region
        $region89: #{tpu_custom_call.1} parent=55 // pred_check
          %p698 = pneg %p269
        $region90: #{tpu_custom_call.1} parent=55 // pred_check_branch
          %700 = sbr.rel (%p698) target = $region92
        $region91: #{tpu_custom_call.1} parent=55 // pred_region
          %702 = vsyncadd %s694, 0
          %s703 = smul.addr %s35, 8
          %s704 = scalar_lea.hbm %s9, %s703
          %s706 = sshll.u32 %s697, 4
          %s707 = int_to_ptr.vmem [resolvable:$true] %s706
          %s708 = sshll.u32 %s704, 4
          %s709 = int_to_ptr.hbm [resolvable:$true] %s708
          %711 = dma.vmem_to_hbm [thread:$0]  %s707, 128, %s709, %s694
        $region92: #{tpu_custom_call.1} parent=55 // pred_fallthru
          _
      $region56: #{tpu_custom_call.1} parent=5 // pred_fallthru
        _
      %p712 = scmp.le.s32.totalorder 2, %s26
      // Predicated region
      $region93: #{tpu_custom_call.1} parent=5 // pred_check
        %p713 = pneg %p712
      $region94: #{tpu_custom_call.1} parent=5 // pred_check_branch
        %715 = sbr.rel (%p713) target = $region96
      $region95: #{tpu_custom_call.1} parent=5 // pred_region
        %s716 = ssub.s32 %s26, 2
        // Predicated region
        $region97: #{tpu_custom_call.1} parent=95 // pred_check
          %p717 = pneg %p275
        $region98: #{tpu_custom_call.1} parent=95 // pred_check_branch
          %719 = sbr.rel (%p717) target = $region100
        $region99: #{tpu_custom_call.1} parent=95 // pred_region
          %s720 = sand.u32 %s260, 1
          %s721 = scalar_lea.sflag [#allocation8], %s720
          %s722 = sand.u32 %s260, 1
          %s723 = smul.addr %s722, 8
          %s724 = scalar_lea.vmem [#allocation17], %s723
          %726 = dma.done %s721, 128
        $region100: #{tpu_custom_call.1} parent=95 // pred_fallthru
          _
      $region96: #{tpu_custom_call.1} parent=5 // pred_fallthru
        _
    $region6: #{tpu_custom_call.1} parent=1 // loop_footer
      %s30 = sadd.s32 1, %s26
    $region7: #{tpu_custom_call.1} parent=1 // loop_footer_branch
      %25 = sbr.rel target = $region3
    $region8: #{tpu_custom_call.1} parent=1 // loop_exit
      _
    %727 = vsyncpa [#allocation7], 1
    %s728 = scalar_lea.sflag [#allocation7], 1
    %729 = vsyncpa %s728, 1
    %730 = vsyncpa [#allocation10], 1
    %s731 = scalar_lea.sflag [#allocation10], 1
    %732 = vsyncpa %s731, 1
    %733 = vsyncpa [#allocation13], 1
    %734 = vsyncpa [#allocation16], 1
    %735 = vsyncpa [#allocation8], 1
    %s736 = scalar_lea.sflag [#allocation8], 1
    %737 = vsyncpa %s736, 1

</llo_original>
